<compile_context>
chip_gen: v7x
topology: tpu7x:2x2x1
jax: 0.10.0
libtpu: 0.0.40
codegen_flags: <defaults>
</compile_context>

<pallas_src>
import functools

import jax
import jax.numpy as jnp
from jax.experimental import pallas as pl
from jax.experimental.pallas import tpu as pltpu

LANES = 128
_VMEM_LIMIT_BYTES = 48 * 1024 * 1024

# Target input-tile bytes per activation (double-buffered in+out => ~4x in flight).
_BLOCK_BYTES_RELU = 8 * 1024 * 1024
_BLOCK_BYTES_SILU = 4 * 1024 * 1024
_BLOCK_BYTES_SILU_UPCAST = 2 * 1024 * 1024


def _cdiv(a, b):
    return -(-a // b)


# ----------------------------- Pallas kernel --------------------------------
def _activation_kernel(x_ref, o_ref, *, act_type, negative_slope, upcast_f32):
    x = x_ref[...]
    if act_type == "relu":
        y = jnp.maximum(x, 0)                       # weak-typed 0: no broadcast
    elif act_type == "leaky_relu":
        if 0.0 <= negative_slope < 1.0:
            y = jnp.maximum(x, x * negative_slope)  # mul+max (vs cmp+mul+select)
        else:
            y = jnp.where(x >= 0, x, x * negative_slope)
    elif act_type == "silu":
        if upcast_f32 and x.dtype != jnp.float32:
            # Single up/down cast pair — only used on v5-class chips where
            # VPU/EUP lack native bf16.
            xf = x.astype(jnp.float32)
            y = (xf * jax.nn.sigmoid(xf)).astype(x.dtype)
        else:
            y = x * jax.nn.sigmoid(x)               # native-dtype EUP sigmoid
    else:
        raise ValueError(act_type)
    o_ref[...] = y


# ------------------------- Plain-jnp path (tiny tails) ------------------------
def _act_jnp(x, act_type, negative_slope, upcast_f32):
    if act_type == "relu":
        return jnp.maximum(x, 0)
    if act_type == "leaky_relu":
        if 0.0 <= negative_slope < 1.0:
            return jnp.maximum(x, x * negative_slope)
        return jnp.where(x >= 0, x, x * negative_slope)
    if act_type == "silu":
        if upcast_f32 and x.dtype != jnp.float32:
            xf = x.astype(jnp.float32)
            return (xf * jax.nn.sigmoid(xf)).astype(x.dtype)
        return x * jax.nn.sigmoid(x)
    raise ValueError(act_type)


# --------------------------------- Wrapper ------------------------------------
def _choose_width(n):
    """(width, exact): widest lane-dense width dividing n, else widest <= n."""
    for w in (2048, 1024, 512, 256, LANES):
        if n % w == 0:
            return w, True
    for w in (2048, 1024, 512, 256, LANES):
        if n >= w:
            return w, False
    return 0, False  # n < 128: too small for a TPU tile


def _choose_tm(rows, width, itemsize, target_bytes, sub_min):
    """Row-block size: large (target_bytes), sub_min-aligned, and — when the
    row count permits — chosen so the grid has an even, balanced number of
    blocks (>= 2) so v7x's two TensorCores both get work."""
    if rows <= sub_min:
        return rows  # single block equal to full extent (valid BlockSpec)
    tm_cap = max(sub_min,
                 (target_bytes // (width * itemsize)) // sub_min * sub_min)
    nblk = max(2, _cdiv(rows, tm_cap))
    if nblk % 2:
        nblk += 1
    tm = _cdiv(_cdiv(rows, nblk), sub_min) * sub_min
    return int(max(sub_min, min(tm, rows)))


def _silu_upcast_f32(dtype):
    """f32 upcast for sub-f32 silu only on v5-class (or unknown) chips."""
    if dtype == jnp.float32:
        return False
    try:
        kind = jax.devices()[0].device_kind.lower()
    except Exception:
        return True
    return not ("v6" in kind or "v7" in kind)


def _run_kernel(x2d, act_type, negative_slope, upcast_f32):
    rows, width = x2d.shape
    dtype = x2d.dtype
    itemsize = jnp.dtype(dtype).itemsize
    sub_min = 8 * max(1, 4 // itemsize)  # 8 (f32) / 16 (bf16) / 32 (int8)
    if act_type == "silu":
        target = _BLOCK_BYTES_SILU_UPCAST if upcast_f32 else _BLOCK_BYTES_SILU
    else:
        target = _BLOCK_BYTES_RELU
    tm = _choose_tm(rows, width, itemsize, target, sub_min)
    grid = (_cdiv(rows, tm),)  # Pallas masks the partial tail block.
    n = rows * width

    kernel = functools.partial(
        _activation_kernel, act_type=act_type,
        negative_slope=negative_slope, upcast_f32=upcast_f32)

    return pl.pallas_call(
        kernel,
        out_shape=jax.ShapeDtypeStruct((rows, width), dtype),
        grid_spec=pltpu.PrefetchScalarGridSpec(
            num_scalar_prefetch=0,
            grid=grid,
            in_specs=[pl.BlockSpec((tm, width), lambda i: (i, 0))],
            out_specs=pl.BlockSpec((tm, width), lambda i: (i, 0)),
        ),
        compiler_params=pltpu.CompilerParams(
            dimension_semantics=("parallel",),
            vmem_limit_bytes=_VMEM_LIMIT_BYTES),
        cost_estimate=pl.CostEstimate(
            flops=(4 * n if act_type == "silu" else 2 * n),
            transcendentals=(n if act_type == "silu" else 0),
            bytes_accessed=2 * n * itemsize),
    )(x2d)


def activation(x, act_type="relu", negative_slope=0.01):
    """Elementwise activation via a Pallas TPU kernel. Any shape; same dtype.

    Note: floating dtypes are supported; leaky_relu's slope would truncate on
    integer inputs (as would PyTorch's conv-activation usage — not supported).
    """
    if act_type not in ("relu", "leaky_relu", "silu"):
        raise ValueError(act_type)
    orig_shape = x.shape
    n = x.size
    if n == 0:
        return x
    upcast_f32 = _silu_upcast_f32(x.dtype) if act_type == "silu" else False
    width, exact = _choose_width(n)
    x_flat = jnp.ravel(x)

    if exact:
        out2d = _run_kernel(x_flat.reshape(n // width, width),
                            act_type, negative_slope, upcast_f32)
        return out2d.reshape(orig_shape)

    if width == 0:
        # < 128 elements: not worth a TPU tile.
        return _act_jnp(x_flat, act_type, negative_slope,
                        upcast_f32).reshape(orig_shape)

    # Ragged: kernel on the lane-aligned prefix, tiny (< width) jnp tail.
    # Avoids the previous full-array zero-pad copy (3x HBM traffic).
    n_main = (n // width) * width
    main = _run_kernel(x_flat[:n_main].reshape(n_main // width, width),
                       act_type, negative_slope, upcast_f32)
    tail = _act_jnp(x_flat[n_main:], act_type, negative_slope, upcast_f32)
    return jnp.concatenate([main.reshape(-1), tail]).reshape(orig_shape)


class Activation:
    """Functional mirror of the PyTorch module."""

    def __init__(self, act_type, **params):
        if act_type not in ("relu", "leaky_relu", "silu"):
            raise ValueError(act_type)
        self.act_type = act_type
        self.negative_slope = params.get("negative_slope", 0.01)

    def __call__(self, x):
        return activation(x, self.act_type, self.negative_slope)


# --------------------------------- Main ---------------------------------------
if __name__ == "__main__":
    key = jax.random.PRNGKey(0)
    k1, k2, k3 = jax.random.split(key, 3)
    # NCHW, matching the PyTorch conv convention.
    x_f32 = jax.random.normal(k1, (2, 4, 16, 16), dtype=jnp.float32)
    x_bf16 = jax.random.normal(k2, (2, 4, 16, 16), dtype=jnp.bfloat16)
    # Awkward shape exercising the ragged prefix+tail path.
    x_ragged = jax.random.normal(k3, (2, 3, 7, 5), dtype=jnp.float32)

    def ref_fn(x, act_type, slope=0.01):
        xf = x.astype(jnp.float32)
        if act_type == "relu":
            r = jnp.maximum(xf, 0.0)
        elif act_type == "leaky_relu":
            r = jnp.where(xf >= 0, xf, xf * slope)
        else:
            r = xf * jax.nn.sigmoid(xf)
        return r.astype(x.dtype)

    ok = True
    for x in (x_f32, x_bf16, x_ragged):
        for act_type in ("relu", "leaky_relu", "silu"):
            mod = Activation(act_type, negative_slope=0.01)
            out = jax.block_until_ready(mod(x))
            ref = ref_fn(x, act_type, 0.01)
            if out.shape != x.shape or out.dtype != x.dtype:
                ok = False
            if x.dtype == jnp.bfloat16:
                # Native bf16 silu on v6e/v7x differs from the f32-internal
                # reference at bf16 ULP level — use a looser tolerance.
                close = jnp.allclose(out.astype(jnp.float32),
                                     ref.astype(jnp.float32),
                                     atol=3e-2, rtol=3e-2)
            else:
                close = jnp.allclose(out, ref, atol=1e-5, rtol=1e-5)
            if not bool(close):
                ok = False

    print("KERNEL_OK" if ok else "KERNEL_MISMATCH")
</pallas_src>

<mosaic_0001>
module attributes {stable_mosaic.version = 11 : i64} {
  func.func @_activation_kernel(%arg0: i32, %arg1: memref<1x2048xf32, #tpu.memory_space<vmem>>, %arg2: memref<1x2048xf32, #tpu.memory_space<vmem>>) attributes {dimension_semantics = [#tpu.dimension_semantics<parallel>], iteration_bounds = array<i64: 1>, scalar_prefetch = 0 : i64, scratch_operands = 0 : i64, tpu.core_type = #tpu.core_type<tc>, window_params = [{transform_indices = @transform_0, window_bounds = array<i64: 1, 2048>}, {transform_indices = @transform_1, window_bounds = array<i64: 1, 2048>}]} {
    %c0 = arith.constant 0 : index
    %c0_0 = arith.constant 0 : index
    %0 = vector.load %arg1[%c0, %c0_0] : memref<1x2048xf32, #tpu.memory_space<vmem>>, vector<1x2048xf32>
    %cst = arith.constant 0.000000e+00 : f32
    %1 = vector.broadcast %cst : f32 to vector<1x2048xf32>
    %2 = arith.maximumf %0, %1 : vector<1x2048xf32>
    %c0_1 = arith.constant 0 : index
    %c0_2 = arith.constant 0 : index
    %3 = vector.load %arg2[%c0_1, %c0_2] : memref<1x2048xf32, #tpu.memory_space<vmem>>, vector<1x2048xf32>
    tpu.vector_store %arg2[%c0_1, %c0_2], %2 {strides = array<i32>} : memref<1x2048xf32, #tpu.memory_space<vmem>>, vector<1x2048xf32>,
    return
  }
  func.func @transform_0(%arg0: i32) -> (i32, i32) {
    %c0_i32 = arith.constant 0 : i32
    %c0_i32_0 = arith.constant 0 : i32
    return %arg0, %c0_i32 : i32, i32
  }
  func.func @transform_1(%arg0: i32) -> (i32, i32) {
    %c0_i32 = arith.constant 0 : i32
    %c0_i32_0 = arith.constant 0 : i32
    return %arg0, %c0_i32 : i32, i32
  }
}

</mosaic_0001>

<llo_original>
// kernel: tpu_custom_call.1
$region0: #{tpu_custom_call.1}
  #allocation0 [shape = 'u32[]', space=smem, size = 0x4, offset = 0x4, fixed_abs, tag = 'smem constant byte address 0x4 - core index']
  #allocation1 [shape = 'u32[144,128]{1,0:T(1,128)}', space=vmem, size = 0x12000, scoped, tag = 'internal scratch']
  %s0 = inlined_call_operand.hbm [shape: f32[1,2048], index: 0, kind: input, shape index: {}]
  %s1 = inlined_call_operand.hbm [shape: f32[1,2048], index: 1, kind: output, shape index: {}]
  %s2 = sld [smem:[#allocation0]]
  $region18: #{tpu_custom_call.1} parent=0
    _
  %s4 = ssub.s32 1, %s2
  %s5 = scalar_select 0, %s4, %s2
  $region1: #{tpu_custom_call.1} parent=0
    #allocation2 [shape = 'u8[8192]{0}', space=vmem, size = 0x2000, scoped, tag = 'input window, operand 0, single buffered']
    #allocation3 [shape = 's32[1]{0}', space=sflag, size = 0x4, scoped, tag = 'scoped memory for tpu_custom_call.1']
    #allocation4 [shape = 's32[1]{0}', space=sflag, size = 0x4, scoped, tag = 'scoped memory for tpu_custom_call.1']
    #allocation5 [shape = 'u8[8192]{0}', space=vmem, size = 0x2000, scoped, tag = 'output window, operand 0, single buffered']
    %6 = vsyncpa [#allocation3], 0
    %7 = vsyncpa [#allocation4], 0
    // Predicated region
    $region2: #{tpu_custom_call.1} parent=1 // pred_check
      _
    $region3: #{tpu_custom_call.1} parent=1 // pred_check_branch
      %9 = sbr.rel (0) target = $region5
    $region4: #{tpu_custom_call.1} parent=1 // pred_region
      %s11 = ssub.s32 256, 256
      %12 = vsyncadd [#allocation3], %s11
      %s14 = sshll.u32 [#allocation2], 4
      %s15 = int_to_ptr.vmem [resolvable:$true] %s14
      %17 = dma.hbm_to_vmem [thread:$0]  %s0, 256, %s15, [#allocation3]
    $region5: #{tpu_custom_call.1} parent=1 // pred_fallthru
      _
    // Predicated region
    $region6: #{tpu_custom_call.1} parent=1 // pred_check
      _
    $region7: #{tpu_custom_call.1} parent=1 // pred_check_branch
      %19 = sbr.rel (0) target = $region9
    $region8: #{tpu_custom_call.1} parent=1 // pred_region
      %20 = dma.done [#allocation3], 256
    $region9: #{tpu_custom_call.1} parent=1 // pred_fallthru
      _
    %v21 = vld [vmem:[#allocation2] sm:$0xff]
    %v22 = vld [vmem:[#allocation2 + $0x8] sm:$0xff]
    %v23 = vmax.f32 %v21, 0.0
    %v24 = vmax.f32 %v22, 0.0
    %25 = vst [vmem:[#allocation5] sm:$0xff] %v23
    %26 = vst [vmem:[#allocation5 + $0x8] sm:$0xff] %v24
    // Predicated region
    $region10: #{tpu_custom_call.1} parent=1 // pred_check
      _
    $region11: #{tpu_custom_call.1} parent=1 // pred_check_branch
      %28 = sbr.rel (0) target = $region13
    $region12: #{tpu_custom_call.1} parent=1 // pred_region
      %s30 = ssub.s32 256, 256
      %31 = vsyncadd [#allocation4], %s30
      %s33 = sshll.u32 [#allocation5], 4
      %s34 = int_to_ptr.vmem [resolvable:$true] %s33
      %36 = dma.vmem_to_hbm [thread:$0]  %s34, 256, %s1, [#allocation4]
    $region13: #{tpu_custom_call.1} parent=1 // pred_fallthru
      _
    // Predicated region
    $region14: #{tpu_custom_call.1} parent=1 // pred_check
      _
    $region15: #{tpu_custom_call.1} parent=1 // pred_check_branch
      %38 = sbr.rel (0) target = $region17
    $region16: #{tpu_custom_call.1} parent=1 // pred_region
      %39 = dma.done [#allocation4], 256
    $region17: #{tpu_custom_call.1} parent=1 // pred_fallthru
      _
    %40 = vsyncpa [#allocation3], 1
    %41 = vsyncpa [#allocation4], 1

</llo_original>
